<compile_context>
chip_gen: v7x
topology: tpu7x:2x2x1
jax: 0.10.0
libtpu: 0.0.40
codegen_flags: <defaults>
</compile_context>

<pallas_src>
import jax
import jax.numpy as jnp
from jax.experimental import pallas as pl
from jax.experimental.pallas import tpu as pltpu


def _round_up(x, m):
    return ((x + m - 1) // m) * m


def _ann_l2_kernel(x_ref, w1_ref, b1_ref, w2_ref, b2_ref, w3_ref, b3_ref, o_ref):
    # x is read in its HBM dtype (f32) and cast to the MXU compute dtype in-register.
    x = x_ref[...].astype(w1_ref.dtype)
    h1 = jnp.dot(x, w1_ref[...], preferred_element_type=jnp.float32)
    h1 = jnp.maximum(h1 + b1_ref[...], 0.0)                      # f32 VPU epilogue
    h2 = jnp.dot(h1.astype(w2_ref.dtype), w2_ref[...],
                 preferred_element_type=jnp.float32)
    h2 = jnp.maximum(h2 + b2_ref[...], 0.0)
    y = jnp.dot(h2.astype(w3_ref.dtype), w3_ref[...],
                preferred_element_type=jnp.float32)
    o_ref[...] = (y + b3_ref[...]).astype(o_ref.dtype)           # (tb, O) store, O unpadded


def prepare_params(w1, b1, w2, b2, w3, b3, *, compute_dtype=jnp.bfloat16):
    """One-time prep: lane-pad the hidden widths to multiples of 128 and cast the
    matmul operands to the MXU compute dtype.  Do this once at init, NOT per forward,
    so the forward pass does not re-read/re-write all weights in HBM every call."""
    F, H1 = w1.shape
    H2 = w2.shape[1]
    O = w3.shape[1]
    H1p = _round_up(H1, 128)
    H2p = _round_up(H2, 128)

    w1p = jnp.pad(w1, ((0, 0), (0, H1p - H1))).astype(compute_dtype)
    w2p = jnp.pad(w2, ((0, H1p - H1), (0, H2p - H2))).astype(compute_dtype)
    w3p = jnp.pad(w3, ((0, H2p - H2), (0, 0))).astype(compute_dtype)   # O left unpadded
    b1p = jnp.pad(b1, (0, H1p - H1)).reshape(1, H1p).astype(jnp.float32)
    b2p = jnp.pad(b2, (0, H2p - H2)).reshape(1, H2p).astype(jnp.float32)
    b3p = jnp.reshape(b3, (1, O)).astype(jnp.float32)
    return (w1p, b1p, w2p, b2p, w3p, b3p)


# Flipped off (and cached) if this jax build rejects pl.Buffered(1) in pallas_call.
_SINGLE_BUFFER_WEIGHTS = True


def ann_l2_forward(x, params, *, tile_b=1024):
    """Fused 3-layer MLP forward: relu(relu(x@w1+b1)@w2+b2)@w3+b3.

    x:      (B, n_feature) f32
    params: output of prepare_params() (padded / compute-dtype weights & f32 biases)
    Returns f32 (B, n_output).
    """
    global _SINGLE_BUFFER_WEIGHTS
    w1p, b1p, w2p, b2p, w3p, b3p = params
    B, F = x.shape
    assert w1p.shape[0] == F
    H1p = w1p.shape[1]
    H2p = w2p.shape[1]
    O = w3p.shape[1]

    # ---- Batch tiling: big tiles, no divisibility requirement on B, but keep the
    # grid at >= 2 "parallel" steps so v7x's 2 TensorCores both get work. ----
    assert tile_b >= 8 and tile_b % 8 == 0
    tb = min(tile_b, _round_up(B, 8))
    if B > 8 and pl.cdiv(B, tb) < 2:
        tb = _round_up(pl.cdiv(B, 2), 8)
    grid = (pl.cdiv(B, tb),)

    # ---- VMEM budget: actual footprint, capped well below v7x's 64 MiB per-TC. ----
    x_item = jnp.dtype(x.dtype).itemsize
    w_item = jnp.dtype(w1p.dtype).itemsize
    est = (
        2 * tb * F * x_item                                # x tile, double-buffered
        + 2 * tb * O * 4                                   # out tile, double-buffered f32
        + (F * H1p + H1p * H2p + H2p * O) * w_item         # resident weights
        + 8 * (H1p + H2p + _round_up(O, 128)) * 4          # biases (sublane/lane padded)
        + 2 * tb * max(H1p, H2p) * 4                       # f32 h1/h2 intermediates
    )
    vmem_limit = int(min(48 << 20, max(16 << 20, 2 * est)))

    def _call(single_buffer_weights):
        wkw = {"pipeline_mode": pl.Buffered(1)} if single_buffer_weights else {}
        in_specs = [
            # batch-tiled input (f32 in HBM; cast to compute dtype inside the kernel)
            pl.BlockSpec((tb, F), lambda i: (i, 0)),
            # grid-invariant weights / biases: full arrays, resident across tiles,
            # single-buffered when supported (they never change across the grid).
            pl.BlockSpec((F, H1p), lambda i: (0, 0), **wkw),
            pl.BlockSpec((1, H1p), lambda i: (0, 0), **wkw),
            pl.BlockSpec((H1p, H2p), lambda i: (0, 0), **wkw),
            pl.BlockSpec((1, H2p), lambda i: (0, 0), **wkw),
            pl.BlockSpec((H2p, O), lambda i: (0, 0), **wkw),
            pl.BlockSpec((1, O), lambda i: (0, 0), **wkw),
        ]
        return pl.pallas_call(
            _ann_l2_kernel,
            out_shape=jax.ShapeDtypeStruct((B, O), jnp.float32),
            grid_spec=pltpu.PrefetchScalarGridSpec(
                num_scalar_prefetch=0,
                grid=grid,
                in_specs=in_specs,
                out_specs=pl.BlockSpec((tb, O), lambda i: (i, 0)),
            ),
            compiler_params=pltpu.CompilerParams(
                dimension_semantics=("parallel",),   # batch tiles shard across v7x's 2 TCs
                vmem_limit_bytes=vmem_limit,
            ),
        )(x, w1p, b1p, w2p, b2p, w3p, b3p)

    if _SINGLE_BUFFER_WEIGHTS:
        try:
            return _call(True)
        except Exception:
            # This jax build does not accept Buffered(1) here; fall back (and remember).
            _SINGLE_BUFFER_WEIGHTS = False
    return _call(False)


def init_params(key, n_feature, n_hidden1, n_hidden2, n_output, dtype=jnp.float32):
    """torch.nn.Linear-style init: U(-1/sqrt(fan_in), 1/sqrt(fan_in)); weights stored (in, out)."""
    ks = jax.random.split(key, 6)
    bnd1 = 1.0 / (n_feature ** 0.5)
    bnd2 = 1.0 / (n_hidden1 ** 0.5)
    bnd3 = 1.0 / (n_hidden2 ** 0.5)
    w1 = jax.random.uniform(ks[0], (n_feature, n_hidden1), dtype, -bnd1, bnd1)
    b1 = jax.random.uniform(ks[1], (n_hidden1,), dtype, -bnd1, bnd1)
    w2 = jax.random.uniform(ks[2], (n_hidden1, n_hidden2), dtype, -bnd2, bnd2)
    b2 = jax.random.uniform(ks[3], (n_hidden2,), dtype, -bnd2, bnd2)
    w3 = jax.random.uniform(ks[4], (n_hidden2, n_output), dtype, -bnd3, bnd3)
    b3 = jax.random.uniform(ks[5], (n_output,), dtype, -bnd3, bnd3)
    return w1, b1, w2, b2, w3, b3


if __name__ == "__main__":
    # Small shapes consistent with ANN_L2(n_feature, n_hidden1, n_hidden2, n_output).
    batch, n_feature, n_hidden1, n_hidden2, n_output = 16, 32, 64, 64, 8

    key = jax.random.PRNGKey(0)
    kx, kp = jax.random.split(key)
    x = jax.random.normal(kx, (batch, n_feature), dtype=jnp.float32)
    w1, b1, w2, b2, w3, b3 = init_params(kp, n_feature, n_hidden1, n_hidden2, n_output)

    # One-time weight prep (padding + bf16 cast), outside the per-forward path.
    params = prepare_params(w1, b1, w2, b2, w3, b3)

    out = ann_l2_forward(x, params)
    out = jax.block_until_ready(out)

    # Pure-JAX reference using the same bf16 matmul operands / f32 accumulation.
    bf = jnp.bfloat16
    h1 = jnp.maximum(jnp.dot(x.astype(bf), w1.astype(bf),
                             preferred_element_type=jnp.float32) + b1, 0.0)
    h2 = jnp.maximum(jnp.dot(h1.astype(bf), w2.astype(bf),
                             preferred_element_type=jnp.float32) + b2, 0.0)
    ref = jnp.dot(h2.astype(bf), w3.astype(bf),
                  preferred_element_type=jnp.float32) + b3

    assert out.shape == (batch, n_output)
    assert jnp.allclose(out, ref, atol=1e-3, rtol=1e-3)

    print("KERNEL_OK")
</pallas_src>

<mosaic_0001>
module attributes {stable_mosaic.version = 11 : i64} {
  func.func @_ann_l2_kernel(%arg0: i32, %arg1: memref<8x32xf32, #tpu.memory_space<vmem>>, %arg2: memref<32x128xbf16, #tpu.memory_space<vmem>>, %arg3: memref<1x128xf32, #tpu.memory_space<vmem>>, %arg4: memref<128x128xbf16, #tpu.memory_space<vmem>>, %arg5: memref<1x128xf32, #tpu.memory_space<vmem>>, %arg6: memref<128x8xbf16, #tpu.memory_space<vmem>>, %arg7: memref<1x8xf32, #tpu.memory_space<vmem>>, %arg8: memref<8x8xf32, #tpu.memory_space<vmem>>) attributes {dimension_semantics = [#tpu.dimension_semantics<parallel>], iteration_bounds = array<i64: 2>, scalar_prefetch = 0 : i64, scratch_operands = 0 : i64, tpu.core_type = #tpu.core_type<tc>, window_params = [{transform_indices = @transform_0, window_bounds = array<i64: 8, 32>}, {pipeline_mode = #tpu.pipeline_mode<synchronous>, transform_indices = @transform_1, window_bounds = array<i64: 32, 128>}, {pipeline_mode = #tpu.pipeline_mode<synchronous>, transform_indices = @transform_2, window_bounds = array<i64: 1, 128>}, {pipeline_mode = #tpu.pipeline_mode<synchronous>, transform_indices = @transform_3, window_bounds = array<i64: 128, 128>}, {pipeline_mode = #tpu.pipeline_mode<synchronous>, transform_indices = @transform_4, window_bounds = array<i64: 1, 128>}, {pipeline_mode = #tpu.pipeline_mode<synchronous>, transform_indices = @transform_5, window_bounds = array<i64: 128, 8>}, {pipeline_mode = #tpu.pipeline_mode<synchronous>, transform_indices = @transform_6, window_bounds = array<i64: 1, 8>}, {transform_indices = @transform_7, window_bounds = array<i64: 8, 8>}]} {
    %c0 = arith.constant 0 : index
    %c0_0 = arith.constant 0 : index
    %0 = vector.load %arg1[%c0, %c0_0] : memref<8x32xf32, #tpu.memory_space<vmem>>, vector<8x32xf32>
    %1 = arith.truncf %0 : vector<8x32xf32> to vector<8x32xbf16>
    %c0_1 = arith.constant 0 : index
    %c0_2 = arith.constant 0 : index
    %2 = vector.load %arg2[%c0_1, %c0_2] : memref<32x128xbf16, #tpu.memory_space<vmem>>, vector<32x128xbf16>
    %cst = arith.constant dense<0.000000e+00> : vector<8x128xf32>
    %3 = tpu.matmul %1, %2, %cst {dimension_numbers = #tpu.dot_dimension_numbers<[1], [0], [0], [1], [0, 0, 1, 1], [], []>} : vector<8x32xbf16>, vector<32x128xbf16>, vector<8x128xf32> -> vector<8x128xf32>
    %c0_3 = arith.constant 0 : index
    %c0_4 = arith.constant 0 : index
    %4 = vector.load %arg3[%c0_3, %c0_4] : memref<1x128xf32, #tpu.memory_space<vmem>>, vector<1x128xf32>
    %5 = vector.broadcast %4 : vector<1x128xf32> to vector<8x128xf32>
    %6 = arith.addf %3, %5 : vector<8x128xf32>
    %cst_5 = arith.constant 0.000000e+00 : f32
    %7 = vector.broadcast %cst_5 : f32 to vector<8x128xf32>
    %8 = arith.maximumf %6, %7 : vector<8x128xf32>
    %9 = arith.truncf %8 : vector<8x128xf32> to vector<8x128xbf16>
    %c0_6 = arith.constant 0 : index
    %c0_7 = arith.constant 0 : index
    %10 = vector.load %arg4[%c0_6, %c0_7] : memref<128x128xbf16, #tpu.memory_space<vmem>>, vector<128x128xbf16>
    %cst_8 = arith.constant dense<0.000000e+00> : vector<8x128xf32>
    %11 = tpu.matmul %9, %10, %cst_8 {dimension_numbers = #tpu.dot_dimension_numbers<[1], [0], [0], [1], [0, 0, 1, 1], [], []>} : vector<8x128xbf16>, vector<128x128xbf16>, vector<8x128xf32> -> vector<8x128xf32>
    %c0_9 = arith.constant 0 : index
    %c0_10 = arith.constant 0 : index
    %12 = vector.load %arg5[%c0_9, %c0_10] : memref<1x128xf32, #tpu.memory_space<vmem>>, vector<1x128xf32>
    %13 = vector.broadcast %12 : vector<1x128xf32> to vector<8x128xf32>
    %14 = arith.addf %11, %13 : vector<8x128xf32>
    %cst_11 = arith.constant 0.000000e+00 : f32
    %15 = vector.broadcast %cst_11 : f32 to vector<8x128xf32>
    %16 = arith.maximumf %14, %15 : vector<8x128xf32>
    %17 = arith.truncf %16 : vector<8x128xf32> to vector<8x128xbf16>
    %c0_12 = arith.constant 0 : index
    %c0_13 = arith.constant 0 : index
    %18 = vector.load %arg6[%c0_12, %c0_13] : memref<128x8xbf16, #tpu.memory_space<vmem>>, vector<128x8xbf16>
    %cst_14 = arith.constant dense<0.000000e+00> : vector<8x8xf32>
    %19 = tpu.matmul %17, %18, %cst_14 {dimension_numbers = #tpu.dot_dimension_numbers<[1], [0], [0], [1], [0, 0, 1, 1], [], []>} : vector<8x128xbf16>, vector<128x8xbf16>, vector<8x8xf32> -> vector<8x8xf32>
    %c0_15 = arith.constant 0 : index
    %c0_16 = arith.constant 0 : index
    %20 = vector.load %arg7[%c0_15, %c0_16] : memref<1x8xf32, #tpu.memory_space<vmem>>, vector<1x8xf32>
    %21 = vector.broadcast %20 : vector<1x8xf32> to vector<8x8xf32>
    %22 = arith.addf %19, %21 : vector<8x8xf32>
    %c0_17 = arith.constant 0 : index
    %c0_18 = arith.constant 0 : index
    %23 = vector.load %arg8[%c0_17, %c0_18] : memref<8x8xf32, #tpu.memory_space<vmem>>, vector<8x8xf32>
    tpu.vector_store %arg8[%c0_17, %c0_18], %22 {strides = array<i32>} : memref<8x8xf32, #tpu.memory_space<vmem>>, vector<8x8xf32>,
    return
  }
  func.func @transform_0(%arg0: i32) -> (i32, i32) {
    %c0_i32 = arith.constant 0 : i32
    %c0_i32_0 = arith.constant 0 : i32
    return %arg0, %c0_i32 : i32, i32
  }
  func.func @transform_1(%arg0: i32) -> (i32, i32) {
    %c0_i32 = arith.constant 0 : i32
    %c0_i32_0 = arith.constant 0 : i32
    %c0_i32_1 = arith.constant 0 : i32
    return %c0_i32, %c0_i32_0 : i32, i32
  }
  func.func @transform_2(%arg0: i32) -> (i32, i32) {
    %c0_i32 = arith.constant 0 : i32
    %c0_i32_0 = arith.constant 0 : i32
    %c0_i32_1 = arith.constant 0 : i32
    return %c0_i32, %c0_i32_0 : i32, i32
  }
  func.func @transform_3(%arg0: i32) -> (i32, i32) {
    %c0_i32 = arith.constant 0 : i32
    %c0_i32_0 = arith.constant 0 : i32
    %c0_i32_1 = arith.constant 0 : i32
    return %c0_i32, %c0_i32_0 : i32, i32
  }
  func.func @transform_4(%arg0: i32) -> (i32, i32) {
    %c0_i32 = arith.constant 0 : i32
    %c0_i32_0 = arith.constant 0 : i32
    %c0_i32_1 = arith.constant 0 : i32
    return %c0_i32, %c0_i32_0 : i32, i32
  }
  func.func @transform_5(%arg0: i32) -> (i32, i32) {
    %c0_i32 = arith.constant 0 : i32
    %c0_i32_0 = arith.constant 0 : i32
    %c0_i32_1 = arith.constant 0 : i32
    return %c0_i32, %c0_i32_0 : i32, i32
  }
  func.func @transform_6(%arg0: i32) -> (i32, i32) {
    %c0_i32 = arith.constant 0 : i32
    %c0_i32_0 = arith.constant 0 : i32
    %c0_i32_1 = arith.constant 0 : i32
    return %c0_i32, %c0_i32_0 : i32, i32
  }
  func.func @transform_7(%arg0: i32) -> (i32, i32) {
    %c0_i32 = arith.constant 0 : i32
    %c0_i32_0 = arith.constant 0 : i32
    return %arg0, %c0_i32 : i32, i32
  }
}

module attributes {stable_mosaic.version = 11 : i64} {
  func.func @_ann_l2_kernel(%arg0: i32, %arg1: memref<8x32xf32, #tpu.memory_space<vmem>>, %arg2: memref<32x128xbf16, #tpu.memory_space<vmem>>, %arg3: memref<1x128xf32, #tpu.memory_space<vmem>>, %arg4: memref<128x128xbf16, #tpu.memory_space<vmem>>, %arg5: memref<1x128xf32, #tpu.memory_space<vmem>>, %arg6: memref<128x8xbf16, #tpu.memory_space<vmem>>, %arg7: memref<1x8xf32, #tpu.memory_space<vmem>>, %arg8: memref<8x8xf32, #tpu.memory_space<vmem>>) attributes {dimension_semantics = [#tpu.dimension_semantics<parallel>], iteration_bounds = array<i64: 2>, scalar_prefetch = 0 : i64, scratch_operands = 0 : i64, tpu.core_type = #tpu.core_type<tc>, window_params = [{transform_indices = @transform_0, window_bounds = array<i64: 8, 32>}, {pipeline_mode = #tpu.pipeline_mode<synchronous>, transform_indices = @transform_1, window_bounds = array<i64: 32, 128>}, {pipeline_mode = #tpu.pipeline_mode<synchronous>, transform_indices = @transform_2, window_bounds = array<i64: 1, 128>}, {pipeline_mode = #tpu.pipeline_mode<synchronous>, transform_indices = @transform_3, window_bounds = array<i64: 128, 128>}, {pipeline_mode = #tpu.pipeline_mode<synchronous>, transform_indices = @transform_4, window_bounds = array<i64: 1, 128>}, {pipeline_mode = #tpu.pipeline_mode<synchronous>, transform_indices = @transform_5, window_bounds = array<i64: 128, 8>}, {pipeline_mode = #tpu.pipeline_mode<synchronous>, transform_indices = @transform_6, window_bounds = array<i64: 1, 8>}, {transform_indices = @transform_7, window_bounds = array<i64: 8, 8>}]} {
    %c0 = arith.constant 0 : index
    %c0_0 = arith.constant 0 : index
    %0 = vector.load %arg1[%c0, %c0_0] : memref<8x32xf32, #tpu.memory_space<vmem>>, vector<8x32xf32>
    %1 = arith.truncf %0 : vector<8x32xf32> to vector<8x32xbf16>
    %c0_1 = arith.constant 0 : index
    %c0_2 = arith.constant 0 : index
    %2 = vector.load %arg2[%c0_1, %c0_2] : memref<32x128xbf16, #tpu.memory_space<vmem>>, vector<32x128xbf16>
    %cst = arith.constant dense<0.000000e+00> : vector<8x128xf32>
    %3 = tpu.matmul %1, %2, %cst {dimension_numbers = #tpu.dot_dimension_numbers<[1], [0], [0], [1], [0, 0, 1, 1], [], []>} : vector<8x32xbf16>, vector<32x128xbf16>, vector<8x128xf32> -> vector<8x128xf32>
    %c0_3 = arith.constant 0 : index
    %c0_4 = arith.constant 0 : index
    %4 = vector.load %arg3[%c0_3, %c0_4] : memref<1x128xf32, #tpu.memory_space<vmem>>, vector<1x128xf32>
    %5 = vector.broadcast %4 : vector<1x128xf32> to vector<8x128xf32>
    %6 = arith.addf %3, %5 : vector<8x128xf32>
    %cst_5 = arith.constant 0.000000e+00 : f32
    %7 = vector.broadcast %cst_5 : f32 to vector<8x128xf32>
    %8 = arith.maximumf %6, %7 : vector<8x128xf32>
    %9 = arith.truncf %8 : vector<8x128xf32> to vector<8x128xbf16>
    %c0_6 = arith.constant 0 : index
    %c0_7 = arith.constant 0 : index
    %10 = vector.load %arg4[%c0_6, %c0_7] : memref<128x128xbf16, #tpu.memory_space<vmem>>, vector<128x128xbf16>
    %cst_8 = arith.constant dense<0.000000e+00> : vector<8x128xf32>
    %11 = tpu.matmul %9, %10, %cst_8 {dimension_numbers = #tpu.dot_dimension_numbers<[1], [0], [0], [1], [0, 0, 1, 1], [], []>} : vector<8x128xbf16>, vector<128x128xbf16>, vector<8x128xf32> -> vector<8x128xf32>
    %c0_9 = arith.constant 0 : index
    %c0_10 = arith.constant 0 : index
    %12 = vector.load %arg5[%c0_9, %c0_10] : memref<1x128xf32, #tpu.memory_space<vmem>>, vector<1x128xf32>
    %13 = vector.broadcast %12 : vector<1x128xf32> to vector<8x128xf32>
    %14 = arith.addf %11, %13 : vector<8x128xf32>
    %cst_11 = arith.constant 0.000000e+00 : f32
    %15 = vector.broadcast %cst_11 : f32 to vector<8x128xf32>
    %16 = arith.maximumf %14, %15 : vector<8x128xf32>
    %17 = arith.truncf %16 : vector<8x128xf32> to vector<8x128xbf16>
    %c0_12 = arith.constant 0 : index
    %c0_13 = arith.constant 0 : index
    %18 = vector.load %arg6[%c0_12, %c0_13] : memref<128x8xbf16, #tpu.memory_space<vmem>>, vector<128x8xbf16>
    %cst_14 = arith.constant dense<0.000000e+00> : vector<8x8xf32>
    %19 = tpu.matmul %17, %18, %cst_14 {dimension_numbers = #tpu.dot_dimension_numbers<[1], [0], [0], [1], [0, 0, 1, 1], [], []>} : vector<8x128xbf16>, vector<128x8xbf16>, vector<8x8xf32> -> vector<8x8xf32>
    %c0_15 = arith.constant 0 : index
    %c0_16 = arith.constant 0 : index
    %20 = vector.load %arg7[%c0_15, %c0_16] : memref<1x8xf32, #tpu.memory_space<vmem>>, vector<1x8xf32>
    %21 = vector.broadcast %20 : vector<1x8xf32> to vector<8x8xf32>
    %22 = arith.addf %19, %21 : vector<8x8xf32>
    %c0_17 = arith.constant 0 : index
    %c0_18 = arith.constant 0 : index
    %23 = vector.load %arg8[%c0_17, %c0_18] : memref<8x8xf32, #tpu.memory_space<vmem>>, vector<8x8xf32>
    tpu.vector_store %arg8[%c0_17, %c0_18], %22 {strides = array<i32>} : memref<8x8xf32, #tpu.memory_space<vmem>>, vector<8x8xf32>,
    return
  }
  func.func @transform_0(%arg0: i32) -> (i32, i32) {
    %c0_i32 = arith.constant 0 : i32
    %c0_i32_0 = arith.constant 0 : i32
    return %arg0, %c0_i32 : i32, i32
  }
  func.func @transform_1(%arg0: i32) -> (i32, i32) {
    %c0_i32 = arith.constant 0 : i32
    %c0_i32_0 = arith.constant 0 : i32
    %c0_i32_1 = arith.constant 0 : i32
    return %c0_i32, %c0_i32_0 : i32, i32
  }
  func.func @transform_2(%arg0: i32) -> (i32, i32) {
    %c0_i32 = arith.constant 0 : i32
    %c0_i32_0 = arith.constant 0 : i32
    %c0_i32_1 = arith.constant 0 : i32
    return %c0_i32, %c0_i32_0 : i32, i32
  }
  func.func @transform_3(%arg0: i32) -> (i32, i32) {
    %c0_i32 = arith.constant 0 : i32
    %c0_i32_0 = arith.constant 0 : i32
    %c0_i32_1 = arith.constant 0 : i32
    return %c0_i32, %c0_i32_0 : i32, i32
  }
  func.func @transform_4(%arg0: i32) -> (i32, i32) {
    %c0_i32 = arith.constant 0 : i32
    %c0_i32_0 = arith.constant 0 : i32
    %c0_i32_1 = arith.constant 0 : i32
    return %c0_i32, %c0_i32_0 : i32, i32
  }
  func.func @transform_5(%arg0: i32) -> (i32, i32) {
    %c0_i32 = arith.constant 0 : i32
    %c0_i32_0 = arith.constant 0 : i32
    %c0_i32_1 = arith.constant 0 : i32
    return %c0_i32, %c0_i32_0 : i32, i32
  }
  func.func @transform_6(%arg0: i32) -> (i32, i32) {
    %c0_i32 = arith.constant 0 : i32
    %c0_i32_0 = arith.constant 0 : i32
    %c0_i32_1 = arith.constant 0 : i32
    return %c0_i32, %c0_i32_0 : i32, i32
  }
  func.func @transform_7(%arg0: i32) -> (i32, i32) {
    %c0_i32 = arith.constant 0 : i32
    %c0_i32_0 = arith.constant 0 : i32
    return %arg0, %c0_i32 : i32, i32
  }
}

</mosaic_0001>

<llo_original>
// kernel: tpu_custom_call.1
$region0: #{tpu_custom_call.1}
  #allocation0 [shape = 'u32[]', space=smem, size = 0x4, offset = 0x4, fixed_abs, tag = 'smem constant byte address 0x4 - core index']
  #allocation1 [shape = 'u32[144,128]{1,0:T(1,128)}', space=vmem, size = 0x12000, scoped, tag = 'internal scratch']
  %s0 = inlined_call_operand.hbm [shape: f32[16,32], index: 0, kind: input, shape index: {}]
  %s1 = inlined_call_operand.hbm [shape: bf16[32,128], index: 1, kind: input, shape index: {}]
  %s2 = inlined_call_operand.vmem [shape: f32[1,128], index: 2, kind: input, shape index: {}]
  %s3 = inlined_call_operand.vmem [shape: bf16[128,128], index: 3, kind: input, shape index: {}]
  %s4 = inlined_call_operand.vmem [shape: f32[1,128], index: 4, kind: input, shape index: {}]
  %s5 = inlined_call_operand.vmem [shape: bf16[128,8], index: 5, kind: input, shape index: {}]
  %s6 = inlined_call_operand.vmem [shape: f32[1,8], index: 6, kind: input, shape index: {}]
  %s7 = inlined_call_operand.vmem [shape: f32[16,8], index: 7, kind: output, shape index: {}]
  %s8 = sld [smem:[#allocation0]]
  $region69: #{tpu_custom_call.1} parent=0
    _
  %s10 = ssub.s32 1, %s8
  %s11 = scalar_select 0, %s10, %s8
  $region1: #{tpu_custom_call.1} parent=0
    #allocation2 [shape = 'u8[8192]{0}', space=vmem, size = 0x2000, scoped, tag = 'input window, operand 0']
    #allocation3 [shape = 's32[2]{0}', space=sflag, size = 0x8, scoped, tag = 'scoped memory for tpu_custom_call.1']
    #allocation4 [shape = 'u8[8192]{0}', space=vmem, size = 0x2000, scoped, tag = 'input window, operand 1, single buffered']
    #allocation5 [shape = 's32[1]{0}', space=sflag, size = 0x4, scoped, tag = 'scoped memory for tpu_custom_call.1']
    %12 = vsyncpa [#allocation3], 0
    %s13 = scalar_lea.sflag [#allocation3], 1
    %14 = vsyncpa %s13, 0
    %15 = vsyncpa [#allocation5], 0
    loop: start=0, step=1, limit=4
    $region2: #{tpu_custom_call.1} parent=1 // loop_pre_header
      _
    $region3: #{tpu_custom_call.1} parent=1 // loop_header
      %s17 = sphi 0, %s21
      %p18 = scmp.ge.s32.totalorder %s17, 4
      %s27 = sphi 0, %s29
      %s30 = sphi 0, %s27
      %s31 = sphi 0, %s30
      %s47 = sphi 0, %s31
      %s51 = sphi 0, %s51
      %s53 = sphi 0, %s51
      %s54 = sphi 0, %s53
      %s68 = sphi 0, %s54
      %s72 = sphi 0, %s72
      %s74 = sphi 0, %s72
      %s75 = sphi 0, %s74
      %s89 = sphi 0, %s75
      %s93 = sphi 0, %s93
      %s95 = sphi 0, %s93
      %s96 = sphi 0, %s95
      %s110 = sphi 0, %s96
      %s114 = sphi 0, %s114
      %s116 = sphi 0, %s114
      %s117 = sphi 0, %s116
      %s131 = sphi 0, %s117
      %s135 = sphi 0, %s135
      %s137 = sphi 0, %s135
      %s138 = sphi 0, %s137
      %s152 = sphi 0, %s138
      %s156 = sphi 0, %s156
      %s158 = sphi 0, %s156
      %s159 = sphi 0, %s158
      %s173 = sphi 0, %s159
      %s179 = sphi 0, %s181
      %s182 = sphi 0, %s179
      %s183 = sphi 0, %s182
      %s199 = sphi 0, %s183
    $region4: #{tpu_custom_call.1} parent=1 // loop_header_branch
      %20 = sbr.rel (%p18) target = $region8
    $region5: #{tpu_custom_call.1} parent=1 // loop_body
      %s22 = ssub.s32 %s17, 1
      %s23 = ssub.s32 %s17, 2
      %s24 = sadd.s32 %s17, 1
      %s25 = ssub.s32 %s17, %s24
      %p26 = scmp.eq.s32.totalorder %s25, 0
      %s28 = sadd.s32 %s27, 1
      %s29 = scalar_select %p26, %s27, %s28
      %p32 = pneg %p26
      %p33 = scmp.eq.s32.totalorder %s17, 1
      %p34 = por %p32, %p33
      %p35 = scmp.ne.s32.totalorder %s27, %s30
      %p36 = scmp.eq.s32.totalorder %s17, 0
      %p37 = por %p35, %p36
      %p38 = scmp.ne.s32.totalorder %s27, %s30
      %p39 = scmp.eq.s32.totalorder %s22, 1
      %p40 = por %p38, %p39
      %p41 = scmp.ne.s32.totalorder %s30, %s31
      %p42 = scmp.eq.s32.totalorder %s22, 0
      %p43 = por %p41, %p42
      %p44 = scmp.ne.s32.totalorder %s30, %s31
      %p45 = scmp.eq.s32.totalorder %s23, 1
      %p46 = por %p44, %p45
      %p48 = scmp.ne.s32.totalorder %s31, %s47
      %p49 = scmp.eq.s32.totalorder %s23, 0
      %p50 = por %p48, %p49
      %s52 = sadd.s32 %s51, 1
      %p55 = scmp.eq.s32.totalorder %s17, 1
      %p56 = scmp.ne.s32.totalorder %s51, %s53
      %p57 = scmp.eq.s32.totalorder %s17, 0
      %p58 = por %p56, %p57
      %p59 = scmp.ne.s32.totalorder %s51, %s53
      %p60 = scmp.eq.s32.totalorder %s22, 1
      %p61 = por %p59, %p60
      %p62 = scmp.ne.s32.totalorder %s53, %s54
      %p63 = scmp.eq.s32.totalorder %s22, 0
      %p64 = por %p62, %p63
      %p65 = scmp.ne.s32.totalorder %s53, %s54
      %p66 = scmp.eq.s32.totalorder %s23, 1
      %p67 = por %p65, %p66
      %p69 = scmp.ne.s32.totalorder %s54, %s68
      %p70 = scmp.eq.s32.totalorder %s23, 0
      %p71 = por %p69, %p70
      %s73 = sadd.s32 %s72, 1
      %p76 = scmp.eq.s32.totalorder %s17, 1
      %p77 = scmp.ne.s32.totalorder %s72, %s74
      %p78 = scmp.eq.s32.totalorder %s17, 0
      %p79 = por %p77, %p78
      %p80 = scmp.ne.s32.totalorder %s72, %s74
      %p81 = scmp.eq.s32.totalorder %s22, 1
      %p82 = por %p80, %p81
      %p83 = scmp.ne.s32.totalorder %s74, %s75
      %p84 = scmp.eq.s32.totalorder %s22, 0
      %p85 = por %p83, %p84
      %p86 = scmp.ne.s32.totalorder %s74, %s75
      %p87 = scmp.eq.s32.totalorder %s23, 1
      %p88 = por %p86, %p87
      %p90 = scmp.ne.s32.totalorder %s75, %s89
      %p91 = scmp.eq.s32.totalorder %s23, 0
      %p92 = por %p90, %p91
      %s94 = sadd.s32 %s93, 1
      %p97 = scmp.eq.s32.totalorder %s17, 1
      %p98 = scmp.ne.s32.totalorder %s93, %s95
      %p99 = scmp.eq.s32.totalorder %s17, 0
      %p100 = por %p98, %p99
      %p101 = scmp.ne.s32.totalorder %s93, %s95
      %p102 = scmp.eq.s32.totalorder %s22, 1
      %p103 = por %p101, %p102
      %p104 = scmp.ne.s32.totalorder %s95, %s96
      %p105 = scmp.eq.s32.totalorder %s22, 0
      %p106 = por %p104, %p105
      %p107 = scmp.ne.s32.totalorder %s95, %s96
      %p108 = scmp.eq.s32.totalorder %s23, 1
      %p109 = por %p107, %p108
      %p111 = scmp.ne.s32.totalorder %s96, %s110
      %p112 = scmp.eq.s32.totalorder %s23, 0
      %p113 = por %p111, %p112
      %s115 = sadd.s32 %s114, 1
      %p118 = scmp.eq.s32.totalorder %s17, 1
      %p119 = scmp.ne.s32.totalorder %s114, %s116
      %p120 = scmp.eq.s32.totalorder %s17, 0
      %p121 = por %p119, %p120
      %p122 = scmp.ne.s32.totalorder %s114, %s116
      %p123 = scmp.eq.s32.totalorder %s22, 1
      %p124 = por %p122, %p123
      %p125 = scmp.ne.s32.totalorder %s116, %s117
      %p126 = scmp.eq.s32.totalorder %s22, 0
      %p127 = por %p125, %p126
      %p128 = scmp.ne.s32.totalorder %s116, %s117
      %p129 = scmp.eq.s32.totalorder %s23, 1
      %p130 = por %p128, %p129
      %p132 = scmp.ne.s32.totalorder %s117, %s131
      %p133 = scmp.eq.s32.totalorder %s23, 0
      %p134 = por %p132, %p133
      %s136 = sadd.s32 %s135, 1
      %p139 = scmp.eq.s32.totalorder %s17, 1
      %p140 = scmp.ne.s32.totalorder %s135, %s137
      %p141 = scmp.eq.s32.totalorder %s17, 0
      %p142 = por %p140, %p141
      %p143 = scmp.ne.s32.totalorder %s135, %s137
      %p144 = scmp.eq.s32.totalorder %s22, 1
      %p145 = por %p143, %p144
      %p146 = scmp.ne.s32.totalorder %s137, %s138
      %p147 = scmp.eq.s32.totalorder %s22, 0
      %p148 = por %p146, %p147
      %p149 = scmp.ne.s32.totalorder %s137, %s138
      %p150 = scmp.eq.s32.totalorder %s23, 1
      %p151 = por %p149, %p150
      %p153 = scmp.ne.s32.totalorder %s138, %s152
      %p154 = scmp.eq.s32.totalorder %s23, 0
      %p155 = por %p153, %p154
      %s157 = sadd.s32 %s156, 1
      %p160 = scmp.eq.s32.totalorder %s17, 1
      %p161 = scmp.ne.s32.totalorder %s156, %s158
      %p162 = scmp.eq.s32.totalorder %s17, 0
      %p163 = por %p161, %p162
      %p164 = scmp.ne.s32.totalorder %s156, %s158
      %p165 = scmp.eq.s32.totalorder %s22, 1
      %p166 = por %p164, %p165
      %p167 = scmp.ne.s32.totalorder %s158, %s159
      %p168 = scmp.eq.s32.totalorder %s22, 0
      %p169 = por %p167, %p168
      %p170 = scmp.ne.s32.totalorder %s158, %s159
      %p171 = scmp.eq.s32.totalorder %s23, 1
      %p172 = por %p170, %p171
      %p174 = scmp.ne.s32.totalorder %s159, %s173
      %p175 = scmp.eq.s32.totalorder %s23, 0
      %p176 = por %p174, %p175
      %s177 = ssub.s32 %s17, %s24
      %p178 = scmp.eq.s32.totalorder %s177, 0
      %s180 = sadd.s32 %s179, 1
      %s181 = scalar_select %p178, %s179, %s180
      %p184 = pneg %p178
      %p185 = scmp.eq.s32.totalorder %s17, 1
      %p186 = por %p184, %p185
      %p187 = scmp.ne.s32.totalorder %s179, %s182
      %p188 = scmp.eq.s32.totalorder %s17, 0
      %p189 = por %p187, %p188
      %p190 = scmp.ne.s32.totalorder %s179, %s182
      %p191 = scmp.eq.s32.totalorder %s22, 1
      %p192 = por %p190, %p191
      %p193 = scmp.ne.s32.totalorder %s182, %s183
      %p194 = scmp.eq.s32.totalorder %s22, 0
      %p195 = por %p193, %p194
      %p196 = scmp.ne.s32.totalorder %s182, %s183
      %p197 = scmp.eq.s32.totalorder %s23, 1
      %p198 = por %p196, %p197
      %p200 = scmp.ne.s32.totalorder %s183, %s199
      %p201 = scmp.eq.s32.totalorder %s23, 0
      %p202 = por %p200, %p201
      %p203 = scmp.le.s32.totalorder 1, %s17
      %p204 = scmp.lt.s32.totalorder %s17, 3
      %p205 = pnand %p203, %p204
      %p206 = pneg %p205
      // Predicated region
      $region9: #{tpu_custom_call.1} parent=5 // pred_check
        _
      $region10: #{tpu_custom_call.1} parent=5 // pred_check_branch
        %208 = sbr.rel (%p205) target = $region12
      $region11: #{tpu_custom_call.1} parent=5 // pred_region
        %s209 = ssub.s32 %s17, 1
        // Predicated region
        $region13: #{tpu_custom_call.1} parent=11 // pred_check
          %p210 = pneg %p64
        $region14: #{tpu_custom_call.1} parent=11 // pred_check_branch
          %212 = sbr.rel (%p210) target = $region16
        $region15: #{tpu_custom_call.1} parent=11 // pred_region
          %s214 = ssub.s32 256, 256
          %215 = vsyncadd [#allocation5], %s214
          %s216 = sshll.u32 [#allocation4], 4
          %s217 = int_to_ptr.vmem [resolvable:$true] %s216
          %222 = dma.hbm_to_vmem [thread:$0]  %s1, 256, %s217, [#allocation5], 64, 64, 4
        $region16: #{tpu_custom_call.1} parent=11 // pred_fallthru
          _
        // Predicated region
        $region17: #{tpu_custom_call.1} parent=11 // pred_check
          %p223 = pneg %p85
        $region18: #{tpu_custom_call.1} parent=11 // pred_check_branch
          %225 = sbr.rel (%p223) target = $region20
        $region19: #{tpu_custom_call.1} parent=11 // pred_region
          _
        $region20: #{tpu_custom_call.1} parent=11 // pred_fallthru
          _
        // Predicated region
        $region21: #{tpu_custom_call.1} parent=11 // pred_check
          %p226 = pneg %p106
        $region22: #{tpu_custom_call.1} parent=11 // pred_check_branch
          %228 = sbr.rel (%p226) target = $region24
        $region23: #{tpu_custom_call.1} parent=11 // pred_region
          _
        $region24: #{tpu_custom_call.1} parent=11 // pred_fallthru
          _
        // Predicated region
        $region25: #{tpu_custom_call.1} parent=11 // pred_check
          %p229 = pneg %p127
        $region26: #{tpu_custom_call.1} parent=11 // pred_check_branch
          %231 = sbr.rel (%p229) target = $region28
        $region27: #{tpu_custom_call.1} parent=11 // pred_region
          _
        $region28: #{tpu_custom_call.1} parent=11 // pred_fallthru
          _
        // Predicated region
        $region29: #{tpu_custom_call.1} parent=11 // pred_check
          %p232 = pneg %p148
        $region30: #{tpu_custom_call.1} parent=11 // pred_check_branch
          %234 = sbr.rel (%p232) target = $region32
        $region31: #{tpu_custom_call.1} parent=11 // pred_region
          _
        $region32: #{tpu_custom_call.1} parent=11 // pred_fallthru
          _
        // Predicated region
        $region33: #{tpu_custom_call.1} parent=11 // pred_check
          %p235 = pneg %p169
        $region34: #{tpu_custom_call.1} parent=11 // pred_check_branch
          %237 = sbr.rel (%p235) target = $region36
        $region35: #{tpu_custom_call.1} parent=11 // pred_region
          _
        $region36: #{tpu_custom_call.1} parent=11 // pred_fallthru
          _
      $region12: #{tpu_custom_call.1} parent=5 // pred_fallthru
        _
      %p238 = scmp.lt.s32.totalorder %s17, 2
      // Predicated region
      $region37: #{tpu_custom_call.1} parent=5 // pred_check
        %p239 = pneg %p238
      $region38: #{tpu_custom_call.1} parent=5 // pred_check_branch
        %241 = sbr.rel (%p239) target = $region40
      $region39: #{tpu_custom_call.1} parent=5 // pred_region
        // Predicated region
        $region41: #{tpu_custom_call.1} parent=39 // pred_check
          %p242 = pneg %p37
        $region42: #{tpu_custom_call.1} parent=39 // pred_check_branch
          %244 = sbr.rel (%p242) target = $region44
        $region43: #{tpu_custom_call.1} parent=39 // pred_region
          %s245 = sand.u32 %s27, 1
          %s246 = scalar_lea.sflag [#allocation3], %s245
          %s247 = sand.u32 %s27, 1
          %s248 = smul.addr %s247, 8
          %s249 = scalar_lea.vmem [#allocation2], %s248
          %s251 = ssub.s32 128, 128
          %252 = vsyncadd %s246, %s251
          %s253 = smul.addr %s17, 128
          %s254 = scalar_lea.hbm %s0, %s253
          %s256 = sshll.u32 %s249, 4
          %s257 = int_to_ptr.vmem [resolvable:$true] %s256
          %259 = dma.hbm_to_vmem [thread:$0]  %s254, 128, %s257, %s246
        $region44: #{tpu_custom_call.1} parent=39 // pred_fallthru
          _
      $region40: #{tpu_custom_call.1} parent=5 // pred_fallthru
        _
      %p260 = scmp.le.s32.totalorder 1, %s17
      %p261 = scmp.lt.s32.totalorder %s17, 3
      %p262 = pnand %p260, %p261
      %p263 = pneg %p262
      // Predicated region
      $region45: #{tpu_custom_call.1} parent=5 // pred_check
        _
      $region46: #{tpu_custom_call.1} parent=5 // pred_check_branch
        %265 = sbr.rel (%p262) target = $region48
      $region47: #{tpu_custom_call.1} parent=5 // pred_region
        %s266 = ssub.s32 %s17, 1
        %s267 = sand.u32 %s30, 1
        %s268 = scalar_lea.sflag [#allocation3], %s267
        %s269 = sand.u32 %s30, 1
        %s270 = smul.addr %s269, 8
        %s271 = scalar_lea.vmem [#allocation2], %s270
        // Predicated region
        $region49: #{tpu_custom_call.1} parent=47 // pred_check
          %p272 = pneg %p43
        $region50: #{tpu_custom_call.1} parent=47 // pred_check_branch
          %274 = sbr.rel (%p272) target = $region52
        $region51: #{tpu_custom_call.1} parent=47 // pred_region
          %275 = dma.done %s268, 128
        $region52: #{tpu_custom_call.1} parent=47 // pred_fallthru
          _
        // Predicated region
        $region53: #{tpu_custom_call.1} parent=47 // pred_check
          %p276 = pneg %p64
        $region54: #{tpu_custom_call.1} parent=47 // pred_check_branch
          %278 = sbr.rel (%p276) target = $region56
        $region55: #{tpu_custom_call.1} parent=47 // pred_region
          %279 = dma.done [#allocation5], 256
        $region56: #{tpu_custom_call.1} parent=47 // pred_fallthru
          _
        %s280 = sand.u32 %s30, 1
        %s281 = scalar_lea.sflag [#allocation3], %s280
        %s282 = sand.u32 %s30, 1
        %s283 = smul.addr %s282, 8
        %s284 = scalar_lea.vmem [#allocation2], %s283
        %p285 = pneg %p43
        %p286 = pneg %p40
        %p287 = pneg %p64
        %p288 = pneg %p61
        %p289 = pneg %p85
        %p290 = pneg %p82
        %p291 = pneg %p106
        %p292 = pneg %p103
        %p293 = pneg %p127
        %p294 = pneg %p124
        %p295 = pneg %p148
        %p296 = pneg %p145
        %p297 = pneg %p169
        %p298 = pneg %p166
        %p299 = pneg %p195
        %p300 = pneg %p192
        %p301 = scmp.lt.s32.totalorder %s22, 1
        %s302 = scalar_select %p301, %s22, 1
        %s303 = smul.addr %s302, 8
        %s304 = scalar_lea.vmem %s7, %s303
        %p305 = scmp.lt.s32.totalorder %s22, 1
        %s306 = scalar_select %p305, %s22, 1
        %s307 = smul.addr %s306, 8
        %s308 = scalar_lea.vmem %s7, %s307
        %v310 = vld [vmem:[%s271] sm:$0xff]
        %v311 = vpack.c.bf16 %v310, %v310
        %v312 = vld [vmem:[#allocation4] sm:$0xf]
        %v313 = vld [vmem:[#allocation4 + $0x4] sm:$0xf]
        %v314 = vld [vmem:[#allocation4 + $0x8] sm:$0xf]
        %v315 = vld [vmem:[#allocation4 + $0xc] sm:$0xf]
        %v316 = vld [vmem:[%s2] sm:$0x1]
        %v318 = vlaneseq
        %v319 = vshrl.u32 %v318, 7
        %v320 = vsub.s32 0, %v319
        %v321 = vrot.slane %v316, %v320
        %v327 = vunpack.c.l.b16 %v312
        %v328 = vunpack.c.l.b16 %v313
        %v329 = vunpack.c.l.b16 %v314
        %v330 = vunpack.c.l.b16 %v315
        %v331 = vpack.c.b16 %v328, %v327
        %v332 = vpack.c.b16 %v330, %v329
        %vm335 = vcmask 261120
        %v337 = vsel %vm335, %v311, 0
        %339 = vmatprep.subr.bf16.mxu0 0
        %340 = vmatpush1.bf16.msra.mxu0 %v331
        %341 = vmatprep.subr.bf16.mxu0 0
        %342 = vmatpush1.bf16.msra.mxu0 %v332
        %343 = vmatprep.subr.bf16.mxu0 0
        %344 = vmatpush1.bf16.msra.mxu0 0
        %345 = vmatprep.subr.bf16.mxu0 0
        %346 = vmatpush1.bf16.msra.mxu0 0
        %347 = vmatprep.subr.bf16.mxu0 0
        %348 = vmatpush1.bf16.msra.mxu0 0
        %349 = vmatprep.subr.bf16.mxu0 0
        %350 = vmatpush1.bf16.msra.mxu0 0
        %351 = vmatprep.subr.bf16.mxu0 0
        %352 = vmatpush1.bf16.msra.mxu0 0
        %353 = vmatprep.subr.bf16.mxu0 0
        %354 = vmatpush1.bf16.msra.mxu0 0
        %355 = vmatprep.subr.bf16.mxu0 0
        %356 = vmatpush1.bf16.msra.mxu0 0
        %357 = vmatprep.subr.bf16.mxu0 0
        %358 = vmatpush1.bf16.msra.mxu0 0
        %359 = vmatprep.subr.bf16.mxu0 0
        %360 = vmatpush1.bf16.msra.mxu0 0
        %361 = vmatprep.subr.bf16.mxu0 0
        %362 = vmatpush1.bf16.msra.mxu0 0
        %363 = vmatprep.subr.bf16.mxu0 0
        %364 = vmatpush1.bf16.msra.mxu0 0
        %365 = vmatprep.subr.bf16.mxu0 0
        %366 = vmatpush1.bf16.msra.mxu0 0
        %367 = vmatprep.subr.bf16.mxu0 0
        %368 = vmatpush1.bf16.msra.mxu0 0
        %369 = vmatprep.subr.bf16.mxu0 0
        %370 = vmatpush1.bf16.msra.mxu0 0
        %371 = vmatprep.mubr.bf16.mxu0 0
        %372 = vmatmul.mubr.bf16.gmra.mrb[0].mxu0 %v337
        %v373 = vpop.f32.mrb[0].mxu0
        %v374 = vadd.f32 %v321, %v373
        %v375 = vpop.f32.mrb[0].mxu0
        %v376 = vpop.f32.mrb[0].mxu0
        %v377 = vpop.f32.mrb[0].mxu0
        %378 = vdwg.mxu0
        %v379 = vmax.f32 %v374, 0.0
        %v380 = vpack.c.bf16 %v379, %v379
        %v381 = vld [vmem:[%s3] sm:$0xf]
        %v382 = vld [vmem:[%s3 + $0x4] sm:$0xf]
        %v383 = vld [vmem:[%s3 + $0x8] sm:$0xf]
        %v384 = vld [vmem:[%s3 + $0xc] sm:$0xf]
        %v385 = vld [vmem:[%s3 + $0x10] sm:$0xf]
        %v386 = vld [vmem:[%s3 + $0x14] sm:$0xf]
        %v387 = vld [vmem:[%s3 + $0x18] sm:$0xf]
        %v388 = vld [vmem:[%s3 + $0x1c] sm:$0xf]
        %v389 = vld [vmem:[%s3 + $0x20] sm:$0xf]
        %v390 = vld [vmem:[%s3 + $0x24] sm:$0xf]
        %v391 = vld [vmem:[%s3 + $0x28] sm:$0xf]
        %v392 = vld [vmem:[%s3 + $0x2c] sm:$0xf]
        %v393 = vld [vmem:[%s3 + $0x30] sm:$0xf]
        %v394 = vld [vmem:[%s3 + $0x34] sm:$0xf]
        %v395 = vld [vmem:[%s3 + $0x38] sm:$0xf]
        %v396 = vld [vmem:[%s3 + $0x3c] sm:$0xf]
        %v397 = vld [vmem:[%s4] sm:$0x1]
        %v399 = vlaneseq
        %v400 = vshrl.u32 %v399, 7
        %v401 = vsub.s32 0, %v400
        %v402 = vrot.slane %v397, %v401
        %v420 = vunpack.c.l.b16 %v381
        %v421 = vunpack.c.l.b16 %v382
        %v422 = vunpack.c.l.b16 %v383
        %v423 = vunpack.c.l.b16 %v384
        %v424 = vunpack.c.l.b16 %v385
        %v425 = vunpack.c.l.b16 %v386
        %v426 = vunpack.c.l.b16 %v387
        %v427 = vunpack.c.l.b16 %v388
        %v428 = vunpack.c.l.b16 %v389
        %v429 = vunpack.c.l.b16 %v390
        %v430 = vunpack.c.l.b16 %v391
        %v431 = vunpack.c.l.b16 %v392
        %v432 = vunpack.c.l.b16 %v393
        %v433 = vunpack.c.l.b16 %v394
        %v434 = vunpack.c.l.b16 %v395
        %v435 = vunpack.c.l.b16 %v396
        %v436 = vpack.c.b16 %v421, %v420
        %v437 = vpack.c.b16 %v423, %v422
        %v438 = vpack.c.b16 %v425, %v424
        %v439 = vpack.c.b16 %v427, %v426
        %v440 = vpack.c.b16 %v429, %v428
        %v441 = vpack.c.b16 %v431, %v430
        %v442 = vpack.c.b16 %v433, %v432
        %v443 = vpack.c.b16 %v435, %v434
        %452 = vmatprep.subr.bf16.mxu0 0
        %453 = vmatpush1.bf16.msra.mxu0 %v436
        %454 = vmatprep.subr.bf16.mxu0 0
        %455 = vmatpush1.bf16.msra.mxu0 %v437
        %456 = vmatprep.subr.bf16.mxu0 0
        %457 = vmatpush1.bf16.msra.mxu0 %v438
        %458 = vmatprep.subr.bf16.mxu0 0
        %459 = vmatpush1.bf16.msra.mxu0 %v439
        %460 = vmatprep.subr.bf16.mxu0 0
        %461 = vmatpush1.bf16.msra.mxu0 %v440
        %462 = vmatprep.subr.bf16.mxu0 0
        %463 = vmatpush1.bf16.msra.mxu0 %v441
        %464 = vmatprep.subr.bf16.mxu0 0
        %465 = vmatpush1.bf16.msra.mxu0 %v442
        %466 = vmatprep.subr.bf16.mxu0 0
        %467 = vmatpush1.bf16.msra.mxu0 %v443
        %468 = vmatprep.subr.bf16.mxu0 0
        %469 = vmatpush1.bf16.msra.mxu0 0
        %470 = vmatprep.subr.bf16.mxu0 0
        %471 = vmatpush1.bf16.msra.mxu0 0
        %472 = vmatprep.subr.bf16.mxu0 0
        %473 = vmatpush1.bf16.msra.mxu0 0
        %474 = vmatprep.subr.bf16.mxu0 0
        %475 = vmatpush1.bf16.msra.mxu0 0
        %476 = vmatprep.subr.bf16.mxu0 0
        %477 = vmatpush1.bf16.msra.mxu0 0
        %478 = vmatprep.subr.bf16.mxu0 0
        %479 = vmatpush1.bf16.msra.mxu0 0
        %480 = vmatprep.subr.bf16.mxu0 0
        %481 = vmatpush1.bf16.msra.mxu0 0
        %482 = vmatprep.subr.bf16.mxu0 0
        %483 = vmatpush1.bf16.msra.mxu0 0
        %484 = vmatprep.mubr.bf16.mxu0 0
        %485 = vmatmul.mubr.bf16.gmra.mrb[0].mxu0 %v380
        %v486 = vpop.f32.mrb[0].mxu0
        %v487 = vadd.f32 %v402, %v486
        %v488 = vpop.f32.mrb[0].mxu0
        %v489 = vpop.f32.mrb[0].mxu0
        %v490 = vpop.f32.mrb[0].mxu0
        %491 = vdwg.mxu0
        %v492 = vmax.f32 %v487, 0.0
        %v493 = vpack.c.bf16 %v492, %v492
        %v494 = vld [vmem:[%s5] sm:$0xf]
        %v495 = vld [vmem:[%s5 + $0x4] sm:$0xf]
        %v496 = vld [vmem:[%s5 + $0x8] sm:$0xf]
        %v497 = vld [vmem:[%s5 + $0xc] sm:$0xf]
        %v498 = vld [vmem:[%s5 + $0x10] sm:$0xf]
        %v499 = vld [vmem:[%s5 + $0x14] sm:$0xf]
        %v500 = vld [vmem:[%s5 + $0x18] sm:$0xf]
        %v501 = vld [vmem:[%s5 + $0x1c] sm:$0xf]
        %v502 = vld [vmem:[%s5 + $0x20] sm:$0xf]
        %v503 = vld [vmem:[%s5 + $0x24] sm:$0xf]
        %v504 = vld [vmem:[%s5 + $0x28] sm:$0xf]
        %v505 = vld [vmem:[%s5 + $0x2c] sm:$0xf]
        %v506 = vld [vmem:[%s5 + $0x30] sm:$0xf]
        %v507 = vld [vmem:[%s5 + $0x34] sm:$0xf]
        %v508 = vld [vmem:[%s5 + $0x38] sm:$0xf]
        %v509 = vld [vmem:[%s5 + $0x3c] sm:$0xf]
        %v510 = vld [vmem:[%s6] sm:$0x1]
        %v512 = vlaneseq
        %v513 = vshrl.u32 %v512, 7
        %v514 = vsub.s32 0, %v513
        %v515 = vrot.slane %v510, %v514
        %v533 = vunpack.c.l.b16 %v494
        %v534 = vunpack.c.l.b16 %v495
        %v535 = vunpack.c.l.b16 %v496
        %v536 = vunpack.c.l.b16 %v497
        %v537 = vunpack.c.l.b16 %v498
        %v538 = vunpack.c.l.b16 %v499
        %v539 = vunpack.c.l.b16 %v500
        %v540 = vunpack.c.l.b16 %v501
        %v541 = vunpack.c.l.b16 %v502
        %v542 = vunpack.c.l.b16 %v503
        %v543 = vunpack.c.l.b16 %v504
        %v544 = vunpack.c.l.b16 %v505
        %v545 = vunpack.c.l.b16 %v506
        %v546 = vunpack.c.l.b16 %v507
        %v547 = vunpack.c.l.b16 %v508
        %v548 = vunpack.c.l.b16 %v509
        %v549 = vpack.c.b16 %v534, %v533
        %v550 = vpack.c.b16 %v536, %v535
        %v551 = vpack.c.b16 %v538, %v537
        %v552 = vpack.c.b16 %v540, %v539
        %v553 = vpack.c.b16 %v542, %v541
        %v554 = vpack.c.b16 %v544, %v543
        %v555 = vpack.c.b16 %v546, %v545
        %v556 = vpack.c.b16 %v548, %v547
        %565 = vmatprep.subr.bf16.mxu0 0
        %566 = vmatpush1.bf16.msra.mxu0 %v549
        %567 = vmatprep.subr.bf16.mxu0 0
        %568 = vmatpush1.bf16.msra.mxu0 %v550
        %569 = vmatprep.subr.bf16.mxu0 0
        %570 = vmatpush1.bf16.msra.mxu0 %v551
        %571 = vmatprep.subr.bf16.mxu0 0
        %572 = vmatpush1.bf16.msra.mxu0 %v552
        %573 = vmatprep.subr.bf16.mxu0 0
        %574 = vmatpush1.bf16.msra.mxu0 %v553
        %575 = vmatprep.subr.bf16.mxu0 0
        %576 = vmatpush1.bf16.msra.mxu0 %v554
        %577 = vmatprep.subr.bf16.mxu0 0
        %578 = vmatpush1.bf16.msra.mxu0 %v555
        %579 = vmatprep.subr.bf16.mxu0 0
        %580 = vmatpush1.bf16.msra.mxu0 %v556
        %581 = vmatprep.subr.bf16.mxu0 0
        %582 = vmatpush1.bf16.msra.mxu0 0
        %583 = vmatprep.subr.bf16.mxu0 0
        %584 = vmatpush1.bf16.msra.mxu0 0
        %585 = vmatprep.subr.bf16.mxu0 0
        %586 = vmatpush1.bf16.msra.mxu0 0
        %587 = vmatprep.subr.bf16.mxu0 0
        %588 = vmatpush1.bf16.msra.mxu0 0
        %589 = vmatprep.subr.bf16.mxu0 0
        %590 = vmatpush1.bf16.msra.mxu0 0
        %591 = vmatprep.subr.bf16.mxu0 0
        %592 = vmatpush1.bf16.msra.mxu0 0
        %593 = vmatprep.subr.bf16.mxu0 0
        %594 = vmatpush1.bf16.msra.mxu0 0
        %595 = vmatprep.subr.bf16.mxu0 0
        %596 = vmatpush1.bf16.msra.mxu0 0
        %597 = vmatprep.mubr.bf16.mxu0 0
        %598 = vmatmul.mubr.bf16.gmra.mrb[0].mxu0 %v493
        %v599 = vpop.f32.mrb[0].mxu0
        %v600 = vadd.f32 %v515, %v599
        %v601 = vpop.f32.mrb[0].mxu0
        %v602 = vpop.f32.mrb[0].mxu0
        %v603 = vpop.f32.mrb[0].mxu0
        %604 = vdwg.mxu0
        %vm605 = vcmask 64512
        %606 = vst.msk [vmem:[%s308] sm:$0xff] %vm605, %v600
        %p607 = scmp.lt.s32.totalorder %s22, 1
        %s608 = scalar_select %p607, %s22, 1
        %s609 = smul.addr %s608, 8
        %s610 = scalar_lea.vmem %s7, %s609
        // Predicated region
        $region57: #{tpu_custom_call.1} parent=47 // pred_check
          %p611 = pneg %p192
        $region58: #{tpu_custom_call.1} parent=47 // pred_check_branch
          %613 = sbr.rel (%p611) target = $region60
        $region59: #{tpu_custom_call.1} parent=47 // pred_region
          _
        $region60: #{tpu_custom_call.1} parent=47 // pred_fallthru
          _
      $region48: #{tpu_custom_call.1} parent=5 // pred_fallthru
        _
      %p614 = scmp.le.s32.totalorder 2, %s17
      // Predicated region
      $region61: #{tpu_custom_call.1} parent=5 // pred_check
        %p615 = pneg %p614
      $region62: #{tpu_custom_call.1} parent=5 // pred_check_branch
        %617 = sbr.rel (%p615) target = $region64
      $region63: #{tpu_custom_call.1} parent=5 // pred_region
        %s618 = ssub.s32 %s17, 2
        // Predicated region
        $region65: #{tpu_custom_call.1} parent=63 // pred_check
          %p619 = pneg %p198
        $region66: #{tpu_custom_call.1} parent=63 // pred_check_branch
          %621 = sbr.rel (%p619) target = $region68
        $region67: #{tpu_custom_call.1} parent=63 // pred_region
          %p622 = scmp.lt.s32.totalorder %s23, 1
          %s623 = scalar_select %p622, %s23, 1
          %s624 = smul.addr %s623, 8
          %s625 = scalar_lea.vmem %s7, %s624
        $region68: #{tpu_custom_call.1} parent=63 // pred_fallthru
          _
      $region64: #{tpu_custom_call.1} parent=5 // pred_fallthru
        _
    $region6: #{tpu_custom_call.1} parent=1 // loop_footer
      %s21 = sadd.s32 1, %s17
    $region7: #{tpu_custom_call.1} parent=1 // loop_footer_branch
      %16 = sbr.rel target = $region3
    $region8: #{tpu_custom_call.1} parent=1 // loop_exit
      _
    %626 = vsyncpa [#allocation3], 1
    %s627 = scalar_lea.sflag [#allocation3], 1
    %628 = vsyncpa %s627, 1
    %629 = vsyncpa [#allocation5], 1

// kernel: tpu_custom_call.1
$region0: #{tpu_custom_call.1}
  #allocation0 [shape = 'u32[]', space=smem, size = 0x4, offset = 0x4, fixed_abs, tag = 'smem constant byte address 0x4 - core index']
  #allocation1 [shape = 'u32[144,128]{1,0:T(1,128)}', space=vmem, size = 0x12000, scoped, tag = 'internal scratch']
  %s0 = inlined_call_operand.hbm [shape: f32[16,32], index: 0, kind: input, shape index: {}]
  %s1 = inlined_call_operand.hbm [shape: bf16[32,128], index: 1, kind: input, shape index: {}]
  %s2 = inlined_call_operand.vmem [shape: f32[1,128], index: 2, kind: input, shape index: {}]
  %s3 = inlined_call_operand.vmem [shape: bf16[128,128], index: 3, kind: input, shape index: {}]
  %s4 = inlined_call_operand.vmem [shape: f32[1,128], index: 4, kind: input, shape index: {}]
  %s5 = inlined_call_operand.vmem [shape: bf16[128,8], index: 5, kind: input, shape index: {}]
  %s6 = inlined_call_operand.vmem [shape: f32[1,8], index: 6, kind: input, shape index: {}]
  %s7 = inlined_call_operand.vmem [shape: f32[16,8], index: 7, kind: output, shape index: {}]
  %s8 = sld [smem:[#allocation0]]
  $region69: #{tpu_custom_call.1} parent=0
    _
  %s10 = ssub.s32 1, %s8
  %s11 = scalar_select 0, %s10, %s8
  $region1: #{tpu_custom_call.1} parent=0
    #allocation2 [shape = 'u8[8192]{0}', space=vmem, size = 0x2000, scoped, tag = 'input window, operand 0']
    #allocation3 [shape = 's32[2]{0}', space=sflag, size = 0x8, scoped, tag = 'scoped memory for tpu_custom_call.1']
    #allocation4 [shape = 'u8[8192]{0}', space=vmem, size = 0x2000, scoped, tag = 'input window, operand 1, single buffered']
    #allocation5 [shape = 's32[1]{0}', space=sflag, size = 0x4, scoped, tag = 'scoped memory for tpu_custom_call.1']
    %12 = vsyncpa [#allocation3], 0
    %s13 = scalar_lea.sflag [#allocation3], 1
    %14 = vsyncpa %s13, 0
    %15 = vsyncpa [#allocation5], 0
    loop: start=0, step=1, limit=4
    $region2: #{tpu_custom_call.1} parent=1 // loop_pre_header
      _
    $region3: #{tpu_custom_call.1} parent=1 // loop_header
      %s17 = sphi 0, %s21
      %p18 = scmp.ge.s32.totalorder %s17, 4
      %s27 = sphi 0, %s29
      %s30 = sphi 0, %s27
      %s31 = sphi 0, %s30
      %s47 = sphi 0, %s31
      %s51 = sphi 0, %s51
      %s53 = sphi 0, %s51
      %s54 = sphi 0, %s53
      %s68 = sphi 0, %s54
      %s72 = sphi 0, %s72
      %s74 = sphi 0, %s72
      %s75 = sphi 0, %s74
      %s89 = sphi 0, %s75
      %s93 = sphi 0, %s93
      %s95 = sphi 0, %s93
      %s96 = sphi 0, %s95
      %s110 = sphi 0, %s96
      %s114 = sphi 0, %s114
      %s116 = sphi 0, %s114
      %s117 = sphi 0, %s116
      %s131 = sphi 0, %s117
      %s135 = sphi 0, %s135
      %s137 = sphi 0, %s135
      %s138 = sphi 0, %s137
      %s152 = sphi 0, %s138
      %s156 = sphi 0, %s156
      %s158 = sphi 0, %s156
      %s159 = sphi 0, %s158
      %s173 = sphi 0, %s159
      %s179 = sphi 0, %s181
      %s182 = sphi 0, %s179
      %s183 = sphi 0, %s182
      %s199 = sphi 0, %s183
    $region4: #{tpu_custom_call.1} parent=1 // loop_header_branch
      %20 = sbr.rel (%p18) target = $region8
    $region5: #{tpu_custom_call.1} parent=1 // loop_body
      %s22 = ssub.s32 %s17, 1
      %s23 = ssub.s32 %s17, 2
      %s24 = sadd.s32 %s17, 1
      %s25 = ssub.s32 %s17, %s24
      %p26 = scmp.eq.s32.totalorder %s25, 0
      %s28 = sadd.s32 %s27, 1
      %s29 = scalar_select %p26, %s27, %s28
      %p32 = pneg %p26
      %p33 = scmp.eq.s32.totalorder %s17, 1
      %p34 = por %p32, %p33
      %p35 = scmp.ne.s32.totalorder %s27, %s30
      %p36 = scmp.eq.s32.totalorder %s17, 0
      %p37 = por %p35, %p36
      %p38 = scmp.ne.s32.totalorder %s27, %s30
      %p39 = scmp.eq.s32.totalorder %s22, 1
      %p40 = por %p38, %p39
      %p41 = scmp.ne.s32.totalorder %s30, %s31
      %p42 = scmp.eq.s32.totalorder %s22, 0
      %p43 = por %p41, %p42
      %p44 = scmp.ne.s32.totalorder %s30, %s31
      %p45 = scmp.eq.s32.totalorder %s23, 1
      %p46 = por %p44, %p45
      %p48 = scmp.ne.s32.totalorder %s31, %s47
      %p49 = scmp.eq.s32.totalorder %s23, 0
      %p50 = por %p48, %p49
      %s52 = sadd.s32 %s51, 1
      %p55 = scmp.eq.s32.totalorder %s17, 1
      %p56 = scmp.ne.s32.totalorder %s51, %s53
      %p57 = scmp.eq.s32.totalorder %s17, 0
      %p58 = por %p56, %p57
      %p59 = scmp.ne.s32.totalorder %s51, %s53
      %p60 = scmp.eq.s32.totalorder %s22, 1
      %p61 = por %p59, %p60
      %p62 = scmp.ne.s32.totalorder %s53, %s54
      %p63 = scmp.eq.s32.totalorder %s22, 0
      %p64 = por %p62, %p63
      %p65 = scmp.ne.s32.totalorder %s53, %s54
      %p66 = scmp.eq.s32.totalorder %s23, 1
      %p67 = por %p65, %p66
      %p69 = scmp.ne.s32.totalorder %s54, %s68
      %p70 = scmp.eq.s32.totalorder %s23, 0
      %p71 = por %p69, %p70
      %s73 = sadd.s32 %s72, 1
      %p76 = scmp.eq.s32.totalorder %s17, 1
      %p77 = scmp.ne.s32.totalorder %s72, %s74
      %p78 = scmp.eq.s32.totalorder %s17, 0
      %p79 = por %p77, %p78
      %p80 = scmp.ne.s32.totalorder %s72, %s74
      %p81 = scmp.eq.s32.totalorder %s22, 1
      %p82 = por %p80, %p81
      %p83 = scmp.ne.s32.totalorder %s74, %s75
      %p84 = scmp.eq.s32.totalorder %s22, 0
      %p85 = por %p83, %p84
      %p86 = scmp.ne.s32.totalorder %s74, %s75
      %p87 = scmp.eq.s32.totalorder %s23, 1
      %p88 = por %p86, %p87
      %p90 = scmp.ne.s32.totalorder %s75, %s89
      %p91 = scmp.eq.s32.totalorder %s23, 0
      %p92 = por %p90, %p91
      %s94 = sadd.s32 %s93, 1
      %p97 = scmp.eq.s32.totalorder %s17, 1
      %p98 = scmp.ne.s32.totalorder %s93, %s95
      %p99 = scmp.eq.s32.totalorder %s17, 0
      %p100 = por %p98, %p99
      %p101 = scmp.ne.s32.totalorder %s93, %s95
      %p102 = scmp.eq.s32.totalorder %s22, 1
      %p103 = por %p101, %p102
      %p104 = scmp.ne.s32.totalorder %s95, %s96
      %p105 = scmp.eq.s32.totalorder %s22, 0
      %p106 = por %p104, %p105
      %p107 = scmp.ne.s32.totalorder %s95, %s96
      %p108 = scmp.eq.s32.totalorder %s23, 1
      %p109 = por %p107, %p108
      %p111 = scmp.ne.s32.totalorder %s96, %s110
      %p112 = scmp.eq.s32.totalorder %s23, 0
      %p113 = por %p111, %p112
      %s115 = sadd.s32 %s114, 1
      %p118 = scmp.eq.s32.totalorder %s17, 1
      %p119 = scmp.ne.s32.totalorder %s114, %s116
      %p120 = scmp.eq.s32.totalorder %s17, 0
      %p121 = por %p119, %p120
      %p122 = scmp.ne.s32.totalorder %s114, %s116
      %p123 = scmp.eq.s32.totalorder %s22, 1
      %p124 = por %p122, %p123
      %p125 = scmp.ne.s32.totalorder %s116, %s117
      %p126 = scmp.eq.s32.totalorder %s22, 0
      %p127 = por %p125, %p126
      %p128 = scmp.ne.s32.totalorder %s116, %s117
      %p129 = scmp.eq.s32.totalorder %s23, 1
      %p130 = por %p128, %p129
      %p132 = scmp.ne.s32.totalorder %s117, %s131
      %p133 = scmp.eq.s32.totalorder %s23, 0
      %p134 = por %p132, %p133
      %s136 = sadd.s32 %s135, 1
      %p139 = scmp.eq.s32.totalorder %s17, 1
      %p140 = scmp.ne.s32.totalorder %s135, %s137
      %p141 = scmp.eq.s32.totalorder %s17, 0
      %p142 = por %p140, %p141
      %p143 = scmp.ne.s32.totalorder %s135, %s137
      %p144 = scmp.eq.s32.totalorder %s22, 1
      %p145 = por %p143, %p144
      %p146 = scmp.ne.s32.totalorder %s137, %s138
      %p147 = scmp.eq.s32.totalorder %s22, 0
      %p148 = por %p146, %p147
      %p149 = scmp.ne.s32.totalorder %s137, %s138
      %p150 = scmp.eq.s32.totalorder %s23, 1
      %p151 = por %p149, %p150
      %p153 = scmp.ne.s32.totalorder %s138, %s152
      %p154 = scmp.eq.s32.totalorder %s23, 0
      %p155 = por %p153, %p154
      %s157 = sadd.s32 %s156, 1
      %p160 = scmp.eq.s32.totalorder %s17, 1
      %p161 = scmp.ne.s32.totalorder %s156, %s158
      %p162 = scmp.eq.s32.totalorder %s17, 0
      %p163 = por %p161, %p162
      %p164 = scmp.ne.s32.totalorder %s156, %s158
      %p165 = scmp.eq.s32.totalorder %s22, 1
      %p166 = por %p164, %p165
      %p167 = scmp.ne.s32.totalorder %s158, %s159
      %p168 = scmp.eq.s32.totalorder %s22, 0
      %p169 = por %p167, %p168
      %p170 = scmp.ne.s32.totalorder %s158, %s159
      %p171 = scmp.eq.s32.totalorder %s23, 1
      %p172 = por %p170, %p171
      %p174 = scmp.ne.s32.totalorder %s159, %s173
      %p175 = scmp.eq.s32.totalorder %s23, 0
      %p176 = por %p174, %p175
      %s177 = ssub.s32 %s17, %s24
      %p178 = scmp.eq.s32.totalorder %s177, 0
      %s180 = sadd.s32 %s179, 1
      %s181 = scalar_select %p178, %s179, %s180
      %p184 = pneg %p178
      %p185 = scmp.eq.s32.totalorder %s17, 1
      %p186 = por %p184, %p185
      %p187 = scmp.ne.s32.totalorder %s179, %s182
      %p188 = scmp.eq.s32.totalorder %s17, 0
      %p189 = por %p187, %p188
      %p190 = scmp.ne.s32.totalorder %s179, %s182
      %p191 = scmp.eq.s32.totalorder %s22, 1
      %p192 = por %p190, %p191
      %p193 = scmp.ne.s32.totalorder %s182, %s183
      %p194 = scmp.eq.s32.totalorder %s22, 0
      %p195 = por %p193, %p194
      %p196 = scmp.ne.s32.totalorder %s182, %s183
      %p197 = scmp.eq.s32.totalorder %s23, 1
      %p198 = por %p196, %p197
      %p200 = scmp.ne.s32.totalorder %s183, %s199
      %p201 = scmp.eq.s32.totalorder %s23, 0
      %p202 = por %p200, %p201
      %p203 = scmp.le.s32.totalorder 1, %s17
      %p204 = scmp.lt.s32.totalorder %s17, 3
      %p205 = pnand %p203, %p204
      %p206 = pneg %p205
      // Predicated region
      $region9: #{tpu_custom_call.1} parent=5 // pred_check
        _
      $region10: #{tpu_custom_call.1} parent=5 // pred_check_branch
        %208 = sbr.rel (%p205) target = $region12
      $region11: #{tpu_custom_call.1} parent=5 // pred_region
        %s209 = ssub.s32 %s17, 1
        // Predicated region
        $region13: #{tpu_custom_call.1} parent=11 // pred_check
          %p210 = pneg %p64
        $region14: #{tpu_custom_call.1} parent=11 // pred_check_branch
          %212 = sbr.rel (%p210) target = $region16
        $region15: #{tpu_custom_call.1} parent=11 // pred_region
          %s214 = ssub.s32 256, 256
          %215 = vsyncadd [#allocation5], %s214
          %s216 = sshll.u32 [#allocation4], 4
          %s217 = int_to_ptr.vmem [resolvable:$true] %s216
          %222 = dma.hbm_to_vmem [thread:$0]  %s1, 256, %s217, [#allocation5], 64, 64, 4
        $region16: #{tpu_custom_call.1} parent=11 // pred_fallthru
          _
        // Predicated region
        $region17: #{tpu_custom_call.1} parent=11 // pred_check
          %p223 = pneg %p85
        $region18: #{tpu_custom_call.1} parent=11 // pred_check_branch
          %225 = sbr.rel (%p223) target = $region20
        $region19: #{tpu_custom_call.1} parent=11 // pred_region
          _
        $region20: #{tpu_custom_call.1} parent=11 // pred_fallthru
          _
        // Predicated region
        $region21: #{tpu_custom_call.1} parent=11 // pred_check
          %p226 = pneg %p106
        $region22: #{tpu_custom_call.1} parent=11 // pred_check_branch
          %228 = sbr.rel (%p226) target = $region24
        $region23: #{tpu_custom_call.1} parent=11 // pred_region
          _
        $region24: #{tpu_custom_call.1} parent=11 // pred_fallthru
          _
        // Predicated region
        $region25: #{tpu_custom_call.1} parent=11 // pred_check
          %p229 = pneg %p127
        $region26: #{tpu_custom_call.1} parent=11 // pred_check_branch
          %231 = sbr.rel (%p229) target = $region28
        $region27: #{tpu_custom_call.1} parent=11 // pred_region
          _
        $region28: #{tpu_custom_call.1} parent=11 // pred_fallthru
          _
        // Predicated region
        $region29: #{tpu_custom_call.1} parent=11 // pred_check
          %p232 = pneg %p148
        $region30: #{tpu_custom_call.1} parent=11 // pred_check_branch
          %234 = sbr.rel (%p232) target = $region32
        $region31: #{tpu_custom_call.1} parent=11 // pred_region
          _
        $region32: #{tpu_custom_call.1} parent=11 // pred_fallthru
          _
        // Predicated region
        $region33: #{tpu_custom_call.1} parent=11 // pred_check
          %p235 = pneg %p169
        $region34: #{tpu_custom_call.1} parent=11 // pred_check_branch
          %237 = sbr.rel (%p235) target = $region36
        $region35: #{tpu_custom_call.1} parent=11 // pred_region
          _
        $region36: #{tpu_custom_call.1} parent=11 // pred_fallthru
          _
      $region12: #{tpu_custom_call.1} parent=5 // pred_fallthru
        _
      %p238 = scmp.lt.s32.totalorder %s17, 2
      // Predicated region
      $region37: #{tpu_custom_call.1} parent=5 // pred_check
        %p239 = pneg %p238
      $region38: #{tpu_custom_call.1} parent=5 // pred_check_branch
        %241 = sbr.rel (%p239) target = $region40
      $region39: #{tpu_custom_call.1} parent=5 // pred_region
        // Predicated region
        $region41: #{tpu_custom_call.1} parent=39 // pred_check
          %p242 = pneg %p37
        $region42: #{tpu_custom_call.1} parent=39 // pred_check_branch
          %244 = sbr.rel (%p242) target = $region44
        $region43: #{tpu_custom_call.1} parent=39 // pred_region
          %s245 = sand.u32 %s27, 1
          %s246 = scalar_lea.sflag [#allocation3], %s245
          %s247 = sand.u32 %s27, 1
          %s248 = smul.addr %s247, 8
          %s249 = scalar_lea.vmem [#allocation2], %s248
          %s251 = ssub.s32 128, 128
          %252 = vsyncadd %s246, %s251
          %s253 = smul.addr %s17, 128
          %s254 = scalar_lea.hbm %s0, %s253
          %s256 = sshll.u32 %s249, 4
          %s257 = int_to_ptr.vmem [resolvable:$true] %s256
          %259 = dma.hbm_to_vmem [thread:$0]  %s254, 128, %s257, %s246
        $region44: #{tpu_custom_call.1} parent=39 // pred_fallthru
          _
      $region40: #{tpu_custom_call.1} parent=5 // pred_fallthru
        _
      %p260 = scmp.le.s32.totalorder 1, %s17
      %p261 = scmp.lt.s32.totalorder %s17, 3
      %p262 = pnand %p260, %p261
      %p263 = pneg %p262
      // Predicated region
      $region45: #{tpu_custom_call.1} parent=5 // pred_check
        _
      $region46: #{tpu_custom_call.1} parent=5 // pred_check_branch
        %265 = sbr.rel (%p262) target = $region48
      $region47: #{tpu_custom_call.1} parent=5 // pred_region
        %s266 = ssub.s32 %s17, 1
        %s267 = sand.u32 %s30, 1
        %s268 = scalar_lea.sflag [#allocation3], %s267
        %s269 = sand.u32 %s30, 1
        %s270 = smul.addr %s269, 8
        %s271 = scalar_lea.vmem [#allocation2], %s270
        // Predicated region
        $region49: #{tpu_custom_call.1} parent=47 // pred_check
          %p272 = pneg %p43
        $region50: #{tpu_custom_call.1} parent=47 // pred_check_branch
          %274 = sbr.rel (%p272) target = $region52
        $region51: #{tpu_custom_call.1} parent=47 // pred_region
          %275 = dma.done %s268, 128
        $region52: #{tpu_custom_call.1} parent=47 // pred_fallthru
          _
        // Predicated region
        $region53: #{tpu_custom_call.1} parent=47 // pred_check
          %p276 = pneg %p64
        $region54: #{tpu_custom_call.1} parent=47 // pred_check_branch
          %278 = sbr.rel (%p276) target = $region56
        $region55: #{tpu_custom_call.1} parent=47 // pred_region
          %279 = dma.done [#allocation5], 256
        $region56: #{tpu_custom_call.1} parent=47 // pred_fallthru
          _
        %s280 = sand.u32 %s30, 1
        %s281 = scalar_lea.sflag [#allocation3], %s280
        %s282 = sand.u32 %s30, 1
        %s283 = smul.addr %s282, 8
        %s284 = scalar_lea.vmem [#allocation2], %s283
        %p285 = pneg %p43
        %p286 = pneg %p40
        %p287 = pneg %p64
        %p288 = pneg %p61
        %p289 = pneg %p85
        %p290 = pneg %p82
        %p291 = pneg %p106
        %p292 = pneg %p103
        %p293 = pneg %p127
        %p294 = pneg %p124
        %p295 = pneg %p148
        %p296 = pneg %p145
        %p297 = pneg %p169
        %p298 = pneg %p166
        %p299 = pneg %p195
        %p300 = pneg %p192
        %p301 = scmp.lt.s32.totalorder %s22, 1
        %s302 = scalar_select %p301, %s22, 1
        %s303 = smul.addr %s302, 8
        %s304 = scalar_lea.vmem %s7, %s303
        %p305 = scmp.lt.s32.totalorder %s22, 1
        %s306 = scalar_select %p305, %s22, 1
        %s307 = smul.addr %s306, 8
        %s308 = scalar_lea.vmem %s7, %s307
        %v310 = vld [vmem:[%s271] sm:$0xff]
        %v311 = vpack.c.bf16 %v310, %v310
        %v312 = vld [vmem:[#allocation4] sm:$0xf]
        %v313 = vld [vmem:[#allocation4 + $0x4] sm:$0xf]
        %v314 = vld [vmem:[#allocation4 + $0x8] sm:$0xf]
        %v315 = vld [vmem:[#allocation4 + $0xc] sm:$0xf]
        %v316 = vld [vmem:[%s2] sm:$0x1]
        %v318 = vlaneseq
        %v319 = vshrl.u32 %v318, 7
        %v320 = vsub.s32 0, %v319
        %v321 = vrot.slane %v316, %v320
        %v327 = vunpack.c.l.b16 %v312
        %v328 = vunpack.c.l.b16 %v313
        %v329 = vunpack.c.l.b16 %v314
        %v330 = vunpack.c.l.b16 %v315
        %v331 = vpack.c.b16 %v328, %v327
        %v332 = vpack.c.b16 %v330, %v329
        %vm335 = vcmask 261120
        %v337 = vsel %vm335, %v311, 0
        %339 = vmatprep.subr.bf16.mxu0 0
        %340 = vmatpush1.bf16.msra.mxu0 %v331
        %341 = vmatprep.subr.bf16.mxu0 0
        %342 = vmatpush1.bf16.msra.mxu0 %v332
        %343 = vmatprep.subr.bf16.mxu0 0
        %344 = vmatpush1.bf16.msra.mxu0 0
        %345 = vmatprep.subr.bf16.mxu0 0
        %346 = vmatpush1.bf16.msra.mxu0 0
        %347 = vmatprep.subr.bf16.mxu0 0
        %348 = vmatpush1.bf16.msra.mxu0 0
        %349 = vmatprep.subr.bf16.mxu0 0
        %350 = vmatpush1.bf16.msra.mxu0 0
        %351 = vmatprep.subr.bf16.mxu0 0
        %352 = vmatpush1.bf16.msra.mxu0 0
        %353 = vmatprep.subr.bf16.mxu0 0
        %354 = vmatpush1.bf16.msra.mxu0 0
        %355 = vmatprep.subr.bf16.mxu0 0
        %356 = vmatpush1.bf16.msra.mxu0 0
        %357 = vmatprep.subr.bf16.mxu0 0
        %358 = vmatpush1.bf16.msra.mxu0 0
        %359 = vmatprep.subr.bf16.mxu0 0
        %360 = vmatpush1.bf16.msra.mxu0 0
        %361 = vmatprep.subr.bf16.mxu0 0
        %362 = vmatpush1.bf16.msra.mxu0 0
        %363 = vmatprep.subr.bf16.mxu0 0
        %364 = vmatpush1.bf16.msra.mxu0 0
        %365 = vmatprep.subr.bf16.mxu0 0
        %366 = vmatpush1.bf16.msra.mxu0 0
        %367 = vmatprep.subr.bf16.mxu0 0
        %368 = vmatpush1.bf16.msra.mxu0 0
        %369 = vmatprep.subr.bf16.mxu0 0
        %370 = vmatpush1.bf16.msra.mxu0 0
        %371 = vmatprep.mubr.bf16.mxu0 0
        %372 = vmatmul.mubr.bf16.gmra.mrb[0].mxu0 %v337
        %v373 = vpop.f32.mrb[0].mxu0
        %v374 = vadd.f32 %v321, %v373
        %v375 = vpop.f32.mrb[0].mxu0
        %v376 = vpop.f32.mrb[0].mxu0
        %v377 = vpop.f32.mrb[0].mxu0
        %378 = vdwg.mxu0
        %v379 = vmax.f32 %v374, 0.0
        %v380 = vpack.c.bf16 %v379, %v379
        %v381 = vld [vmem:[%s3] sm:$0xf]
        %v382 = vld [vmem:[%s3 + $0x4] sm:$0xf]
        %v383 = vld [vmem:[%s3 + $0x8] sm:$0xf]
        %v384 = vld [vmem:[%s3 + $0xc] sm:$0xf]
        %v385 = vld [vmem:[%s3 + $0x10] sm:$0xf]
        %v386 = vld [vmem:[%s3 + $0x14] sm:$0xf]
        %v387 = vld [vmem:[%s3 + $0x18] sm:$0xf]
        %v388 = vld [vmem:[%s3 + $0x1c] sm:$0xf]
        %v389 = vld [vmem:[%s3 + $0x20] sm:$0xf]
        %v390 = vld [vmem:[%s3 + $0x24] sm:$0xf]
        %v391 = vld [vmem:[%s3 + $0x28] sm:$0xf]
        %v392 = vld [vmem:[%s3 + $0x2c] sm:$0xf]
        %v393 = vld [vmem:[%s3 + $0x30] sm:$0xf]
        %v394 = vld [vmem:[%s3 + $0x34] sm:$0xf]
        %v395 = vld [vmem:[%s3 + $0x38] sm:$0xf]
        %v396 = vld [vmem:[%s3 + $0x3c] sm:$0xf]
        %v397 = vld [vmem:[%s4] sm:$0x1]
        %v399 = vlaneseq
        %v400 = vshrl.u32 %v399, 7
        %v401 = vsub.s32 0, %v400
        %v402 = vrot.slane %v397, %v401
        %v420 = vunpack.c.l.b16 %v381
        %v421 = vunpack.c.l.b16 %v382
        %v422 = vunpack.c.l.b16 %v383
        %v423 = vunpack.c.l.b16 %v384
        %v424 = vunpack.c.l.b16 %v385
        %v425 = vunpack.c.l.b16 %v386
        %v426 = vunpack.c.l.b16 %v387
        %v427 = vunpack.c.l.b16 %v388
        %v428 = vunpack.c.l.b16 %v389
        %v429 = vunpack.c.l.b16 %v390
        %v430 = vunpack.c.l.b16 %v391
        %v431 = vunpack.c.l.b16 %v392
        %v432 = vunpack.c.l.b16 %v393
        %v433 = vunpack.c.l.b16 %v394
        %v434 = vunpack.c.l.b16 %v395
        %v435 = vunpack.c.l.b16 %v396
        %v436 = vpack.c.b16 %v421, %v420
        %v437 = vpack.c.b16 %v423, %v422
        %v438 = vpack.c.b16 %v425, %v424
        %v439 = vpack.c.b16 %v427, %v426
        %v440 = vpack.c.b16 %v429, %v428
        %v441 = vpack.c.b16 %v431, %v430
        %v442 = vpack.c.b16 %v433, %v432
        %v443 = vpack.c.b16 %v435, %v434
        %452 = vmatprep.subr.bf16.mxu0 0
        %453 = vmatpush1.bf16.msra.mxu0 %v436
        %454 = vmatprep.subr.bf16.mxu0 0
        %455 = vmatpush1.bf16.msra.mxu0 %v437
        %456 = vmatprep.subr.bf16.mxu0 0
        %457 = vmatpush1.bf16.msra.mxu0 %v438
        %458 = vmatprep.subr.bf16.mxu0 0
        %459 = vmatpush1.bf16.msra.mxu0 %v439
        %460 = vmatprep.subr.bf16.mxu0 0
        %461 = vmatpush1.bf16.msra.mxu0 %v440
        %462 = vmatprep.subr.bf16.mxu0 0
        %463 = vmatpush1.bf16.msra.mxu0 %v441
        %464 = vmatprep.subr.bf16.mxu0 0
        %465 = vmatpush1.bf16.msra.mxu0 %v442
        %466 = vmatprep.subr.bf16.mxu0 0
        %467 = vmatpush1.bf16.msra.mxu0 %v443
        %468 = vmatprep.subr.bf16.mxu0 0
        %469 = vmatpush1.bf16.msra.mxu0 0
        %470 = vmatprep.subr.bf16.mxu0 0
        %471 = vmatpush1.bf16.msra.mxu0 0
        %472 = vmatprep.subr.bf16.mxu0 0
        %473 = vmatpush1.bf16.msra.mxu0 0
        %474 = vmatprep.subr.bf16.mxu0 0
        %475 = vmatpush1.bf16.msra.mxu0 0
        %476 = vmatprep.subr.bf16.mxu0 0
        %477 = vmatpush1.bf16.msra.mxu0 0
        %478 = vmatprep.subr.bf16.mxu0 0
        %479 = vmatpush1.bf16.msra.mxu0 0
        %480 = vmatprep.subr.bf16.mxu0 0
        %481 = vmatpush1.bf16.msra.mxu0 0
        %482 = vmatprep.subr.bf16.mxu0 0
        %483 = vmatpush1.bf16.msra.mxu0 0
        %484 = vmatprep.mubr.bf16.mxu0 0
        %485 = vmatmul.mubr.bf16.gmra.mrb[0].mxu0 %v380
        %v486 = vpop.f32.mrb[0].mxu0
        %v487 = vadd.f32 %v402, %v486
        %v488 = vpop.f32.mrb[0].mxu0
        %v489 = vpop.f32.mrb[0].mxu0
        %v490 = vpop.f32.mrb[0].mxu0
        %491 = vdwg.mxu0
        %v492 = vmax.f32 %v487, 0.0
        %v493 = vpack.c.bf16 %v492, %v492
        %v494 = vld [vmem:[%s5] sm:$0xf]
        %v495 = vld [vmem:[%s5 + $0x4] sm:$0xf]
        %v496 = vld [vmem:[%s5 + $0x8] sm:$0xf]
        %v497 = vld [vmem:[%s5 + $0xc] sm:$0xf]
        %v498 = vld [vmem:[%s5 + $0x10] sm:$0xf]
        %v499 = vld [vmem:[%s5 + $0x14] sm:$0xf]
        %v500 = vld [vmem:[%s5 + $0x18] sm:$0xf]
        %v501 = vld [vmem:[%s5 + $0x1c] sm:$0xf]
        %v502 = vld [vmem:[%s5 + $0x20] sm:$0xf]
        %v503 = vld [vmem:[%s5 + $0x24] sm:$0xf]
        %v504 = vld [vmem:[%s5 + $0x28] sm:$0xf]
        %v505 = vld [vmem:[%s5 + $0x2c] sm:$0xf]
        %v506 = vld [vmem:[%s5 + $0x30] sm:$0xf]
        %v507 = vld [vmem:[%s5 + $0x34] sm:$0xf]
        %v508 = vld [vmem:[%s5 + $0x38] sm:$0xf]
        %v509 = vld [vmem:[%s5 + $0x3c] sm:$0xf]
        %v510 = vld [vmem:[%s6] sm:$0x1]
        %v512 = vlaneseq
        %v513 = vshrl.u32 %v512, 7
        %v514 = vsub.s32 0, %v513
        %v515 = vrot.slane %v510, %v514
        %v533 = vunpack.c.l.b16 %v494
        %v534 = vunpack.c.l.b16 %v495
        %v535 = vunpack.c.l.b16 %v496
        %v536 = vunpack.c.l.b16 %v497
        %v537 = vunpack.c.l.b16 %v498
        %v538 = vunpack.c.l.b16 %v499
        %v539 = vunpack.c.l.b16 %v500
        %v540 = vunpack.c.l.b16 %v501
        %v541 = vunpack.c.l.b16 %v502
        %v542 = vunpack.c.l.b16 %v503
        %v543 = vunpack.c.l.b16 %v504
        %v544 = vunpack.c.l.b16 %v505
        %v545 = vunpack.c.l.b16 %v506
        %v546 = vunpack.c.l.b16 %v507
        %v547 = vunpack.c.l.b16 %v508
        %v548 = vunpack.c.l.b16 %v509
        %v549 = vpack.c.b16 %v534, %v533
        %v550 = vpack.c.b16 %v536, %v535
        %v551 = vpack.c.b16 %v538, %v537
        %v552 = vpack.c.b16 %v540, %v539
        %v553 = vpack.c.b16 %v542, %v541
        %v554 = vpack.c.b16 %v544, %v543
        %v555 = vpack.c.b16 %v546, %v545
        %v556 = vpack.c.b16 %v548, %v547
        %565 = vmatprep.subr.bf16.mxu0 0
        %566 = vmatpush1.bf16.msra.mxu0 %v549
        %567 = vmatprep.subr.bf16.mxu0 0
        %568 = vmatpush1.bf16.msra.mxu0 %v550
        %569 = vmatprep.subr.bf16.mxu0 0
        %570 = vmatpush1.bf16.msra.mxu0 %v551
        %571 = vmatprep.subr.bf16.mxu0 0
        %572 = vmatpush1.bf16.msra.mxu0 %v552
        %573 = vmatprep.subr.bf16.mxu0 0
        %574 = vmatpush1.bf16.msra.mxu0 %v553
        %575 = vmatprep.subr.bf16.mxu0 0
        %576 = vmatpush1.bf16.msra.mxu0 %v554
        %577 = vmatprep.subr.bf16.mxu0 0
        %578 = vmatpush1.bf16.msra.mxu0 %v555
        %579 = vmatprep.subr.bf16.mxu0 0
        %580 = vmatpush1.bf16.msra.mxu0 %v556
        %581 = vmatprep.subr.bf16.mxu0 0
        %582 = vmatpush1.bf16.msra.mxu0 0
        %583 = vmatprep.subr.bf16.mxu0 0
        %584 = vmatpush1.bf16.msra.mxu0 0
        %585 = vmatprep.subr.bf16.mxu0 0
        %586 = vmatpush1.bf16.msra.mxu0 0
        %587 = vmatprep.subr.bf16.mxu0 0
        %588 = vmatpush1.bf16.msra.mxu0 0
        %589 = vmatprep.subr.bf16.mxu0 0
        %590 = vmatpush1.bf16.msra.mxu0 0
        %591 = vmatprep.subr.bf16.mxu0 0
        %592 = vmatpush1.bf16.msra.mxu0 0
        %593 = vmatprep.subr.bf16.mxu0 0
        %594 = vmatpush1.bf16.msra.mxu0 0
        %595 = vmatprep.subr.bf16.mxu0 0
        %596 = vmatpush1.bf16.msra.mxu0 0
        %597 = vmatprep.mubr.bf16.mxu0 0
        %598 = vmatmul.mubr.bf16.gmra.mrb[0].mxu0 %v493
        %v599 = vpop.f32.mrb[0].mxu0
        %v600 = vadd.f32 %v515, %v599
        %v601 = vpop.f32.mrb[0].mxu0
        %v602 = vpop.f32.mrb[0].mxu0
        %v603 = vpop.f32.mrb[0].mxu0
        %604 = vdwg.mxu0
        %vm605 = vcmask 64512
        %606 = vst.msk [vmem:[%s308] sm:$0xff] %vm605, %v600
        %p607 = scmp.lt.s32.totalorder %s22, 1
        %s608 = scalar_select %p607, %s22, 1
        %s609 = smul.addr %s608, 8
        %s610 = scalar_lea.vmem %s7, %s609
        // Predicated region
        $region57: #{tpu_custom_call.1} parent=47 // pred_check
          %p611 = pneg %p192
        $region58: #{tpu_custom_call.1} parent=47 // pred_check_branch
          %613 = sbr.rel (%p611) target = $region60
        $region59: #{tpu_custom_call.1} parent=47 // pred_region
          _
        $region60: #{tpu_custom_call.1} parent=47 // pred_fallthru
          _
      $region48: #{tpu_custom_call.1} parent=5 // pred_fallthru
        _
      %p614 = scmp.le.s32.totalorder 2, %s17
      // Predicated region
      $region61: #{tpu_custom_call.1} parent=5 // pred_check
        %p615 = pneg %p614
      $region62: #{tpu_custom_call.1} parent=5 // pred_check_branch
        %617 = sbr.rel (%p615) target = $region64
      $region63: #{tpu_custom_call.1} parent=5 // pred_region
        %s618 = ssub.s32 %s17, 2
        // Predicated region
        $region65: #{tpu_custom_call.1} parent=63 // pred_check
          %p619 = pneg %p198
        $region66: #{tpu_custom_call.1} parent=63 // pred_check_branch
          %621 = sbr.rel (%p619) target = $region68
        $region67: #{tpu_custom_call.1} parent=63 // pred_region
          %p622 = scmp.lt.s32.totalorder %s23, 1
          %s623 = scalar_select %p622, %s23, 1
          %s624 = smul.addr %s623, 8
          %s625 = scalar_lea.vmem %s7, %s624
        $region68: #{tpu_custom_call.1} parent=63 // pred_fallthru
          _
      $region64: #{tpu_custom_call.1} parent=5 // pred_fallthru
        _
    $region6: #{tpu_custom_call.1} parent=1 // loop_footer
      %s21 = sadd.s32 1, %s17
    $region7: #{tpu_custom_call.1} parent=1 // loop_footer_branch
      %16 = sbr.rel target = $region3
    $region8: #{tpu_custom_call.1} parent=1 // loop_exit
      _
    %626 = vsyncpa [#allocation3], 1
    %s627 = scalar_lea.sflag [#allocation3], 1
    %628 = vsyncpa %s627, 1
    %629 = vsyncpa [#allocation5], 1

</llo_original>
